<compile_context>
chip_gen: v7x
topology: tpu7x:2x2x1
jax: 0.10.0
libtpu: 0.0.40
codegen_flags: <defaults>
</compile_context>

<pallas_src>
import jax
import jax.numpy as jnp
from jax import lax
from jax.experimental import pallas as pl
from jax.experimental.pallas import tpu as pltpu


_DEFAULT_TILE_N = 512  # rows per grid step; ~0.5 MiB per f32 activation buffer at D=256


def _round_up(a: int, b: int) -> int:
    return ((a + b - 1) // b) * b


def _keep_mask(shape, seed_u32, layer_salt_u32, row0_u32):
    """Counter-based Bernoulli(0.5) keep-mask (murmur3-style finalizer).

    Pure 32-bit integer VPU ops -> lowers on TPU Mosaic and in interpret mode.
    Every (global_row, col, layer, seed) tuple gets an independent bit, so row
    tiles and layers never share a mask.
    """
    rows = lax.broadcasted_iota(jnp.int32, shape, 0).astype(jnp.uint32) + row0_u32
    cols = lax.broadcasted_iota(jnp.int32, shape, 1).astype(jnp.uint32)
    h = rows * jnp.uint32(0x9E3779B9) + cols * jnp.uint32(0x85EBCA6B)
    h = h ^ (seed_u32 * jnp.uint32(0x27D4EB2F) + layer_salt_u32 * jnp.uint32(0x165667B1))
    h = h ^ (h >> 16)
    h = h * jnp.uint32(0x7FEB352D)
    h = h ^ (h >> 15)
    h = h * jnp.uint32(0x846CA68B)
    h = h ^ (h >> 16)
    return h < jnp.uint32(0x80000000)  # P(keep) = 0.5


def _make_prenet_kernel(n_layers: int):
    """Fused kernel: for each layer  y = dropout(relu(y @ W_l))  on one row tile."""

    def kernel(seed_ref, x_ref, *rest):
        # seed_ref: SMEM (1,) int32 scalar-prefetch
        # x_ref:    [TILE_N, D_in]       VMEM (row tile, pipelined over grid)
        # rest:     W_0..W_{L-1} (bf16, resident across grid), then o_ref
        w_refs = rest[:n_layers]
        o_ref = rest[n_layers]

        seed = seed_ref[0].astype(jnp.uint32)
        tile_rows = x_ref.shape[0]
        row0 = (pl.program_id(0) * tile_rows).astype(jnp.uint32)

        h = x_ref[...].astype(jnp.bfloat16)
        for li in range(n_layers):
            # MXU matmul, bf16 inputs, f32 accumulation.
            y = jnp.dot(h, w_refs[li][...], preferred_element_type=jnp.float32)
            # ReLU then inverted dropout (p=0.5): keep -> 2*y, drop -> 0.
            y = jnp.maximum(y, 0.0)
            keep = _keep_mask(y.shape, seed, jnp.uint32(li + 1), row0)
            y = jnp.where(keep, y + y, 0.0)
            h = y.astype(jnp.bfloat16) if li + 1 < n_layers else y
        o_ref[...] = h.astype(o_ref.dtype)

    return kernel


def prenet_forward(x, weights, dropout_seed, *, tile_n: int = _DEFAULT_TILE_N):
    """Full Prenet as a single fused Pallas kernel.

    x:       [..., in_dim] float32.
    weights: list of [d_in, d_out] arrays (pre-transposed vs. torch Linear, bias=False).
    dropout_seed: int or int32 scalar.  Pass a FRESH seed every call to mimic
                  torch's per-call dropout draw (static seed = same mask every call).
    """
    orig_shape = x.shape
    in_dim = orig_shape[-1]
    x2d = x.reshape(-1, in_dim).astype(jnp.float32)
    n = x2d.shape[0]
    n_layers = len(weights)
    d_out = weights[-1].shape[1]

    # Store weights bf16 in HBM: halves weight DMA; matmul still accumulates f32.
    ws = [w.astype(jnp.bfloat16) for w in weights]

    # Row tile: largest multiple of 8 up to tile_n; pad N so the grid divides exactly
    # (zero rows are harmless: relu/dropout keep them at 0; sliced off afterwards).
    tile = min(tile_n, _round_up(n, 8))
    n_pad = _round_up(n, tile)
    if n_pad != n:
        x2d = jnp.pad(x2d, ((0, n_pad - n), (0, 0)))

    seed_arr = jnp.atleast_1d(jnp.asarray(dropout_seed, dtype=jnp.int32))

    # index_maps get (grid_i, seed_ref); weights pinned at block (0,0) -> VMEM-resident.
    in_specs = [pl.BlockSpec((tile, in_dim), lambda i, s: (i, 0))]
    for w in ws:
        in_specs.append(pl.BlockSpec(w.shape, lambda i, s: (0, 0)))

    dims = [in_dim] + [w.shape[1] for w in ws]
    flops = sum(2 * n_pad * a * b for a, b in zip(dims[:-1], dims[1:]))
    bytes_accessed = (n_pad * in_dim + n_pad * d_out) * 4 + sum(w.size * 2 for w in ws)

    out = pl.pallas_call(
        _make_prenet_kernel(n_layers),
        out_shape=jax.ShapeDtypeStruct((n_pad, d_out), jnp.float32),
        grid_spec=pltpu.PrefetchScalarGridSpec(
            num_scalar_prefetch=1,
            grid=(n_pad // tile,),
            in_specs=in_specs,
            out_specs=pl.BlockSpec((tile, d_out), lambda i, s: (i, 0)),
        ),
        compiler_params=pltpu.CompilerParams(
            # Row tiles are independent -> shard across both TCs on v7x.
            dimension_semantics=("parallel",)),
        cost_estimate=pl.CostEstimate(
            flops=flops, transcendentals=0, bytes_accessed=bytes_accessed),
    )(seed_arr, x2d, *ws)

    out = out[:n]
    return out.reshape(*orig_shape[:-1], d_out)


def init_prenet_params(key, in_dim: int, sizes):
    """Xavier-uniform init (gain=1) matching LinearNorm(bias=False).
    Returned weights are pre-transposed to [in_dim, out_dim]."""
    in_sizes = [in_dim] + list(sizes[:-1])
    params = []
    for d_in, d_out in zip(in_sizes, sizes):
        key, sub = jax.random.split(key)
        bound = (6.0 / (d_in + d_out)) ** 0.5
        params.append(jax.random.uniform(sub, (d_in, d_out), jnp.float32, -bound, bound))
    return params


def _prenet_reference(x, weights, dropout_seed):
    """Pure-JAX reference using the identical hash-based dropout mask."""
    orig_shape = x.shape
    x2d = x.reshape(-1, orig_shape[-1]).astype(jnp.float32)
    seed = jnp.asarray(dropout_seed, jnp.int32).astype(jnp.uint32)
    h = x2d.astype(jnp.bfloat16)
    for li, w in enumerate(weights):
        y = jnp.dot(h, w.astype(jnp.bfloat16), preferred_element_type=jnp.float32)
        y = jnp.maximum(y, 0.0)
        keep = _keep_mask(y.shape, seed, jnp.uint32(li + 1), jnp.uint32(0))
        y = jnp.where(keep, y + y, 0.0)
        h = y.astype(jnp.bfloat16) if li + 1 < len(weights) else y
    return h.reshape(*orig_shape[:-1], weights[-1].shape[1])


if __name__ == "__main__":
    key = jax.random.PRNGKey(0)
    k_x, k_p = jax.random.split(key)

    # Small shapes, canonical Tacotron2 Prenet feature dims (lane-dense 256 outputs).
    B, T = 2, 8
    in_dim = 80
    sizes = [256, 256]

    x = jax.random.normal(k_x, (B, T, in_dim), dtype=jnp.float32)
    params = init_prenet_params(k_p, in_dim, sizes)

    seed = 123  # NOTE: callers should pass a fresh seed each forward call (torch draws a new mask per call)
    out = prenet_forward(x, params, dropout_seed=seed)
    out = jax.block_until_ready(out)

    assert out.shape == (B, T, sizes[-1]), out.shape
    assert bool(jnp.all(jnp.isfinite(out)))
    assert bool(jnp.all(out >= 0.0))   # relu + dropout => non-negative
    assert bool(jnp.any(out == 0.0))   # dropout actually zeroes entries

    ref = _prenet_reference(x, params, seed)
    assert bool(jnp.allclose(out, ref, rtol=5e-2, atol=5e-2)), float(
        jnp.max(jnp.abs(out - ref)))

    print("KERNEL_OK")
</pallas_src>

<mosaic_0001>
module attributes {stable_mosaic.version = 11 : i64} {
  func.func @kernel(%arg0: i32, %arg1: memref<1xi32, #tpu.memory_space<smem>>, %arg2: memref<16x80xf32, #tpu.memory_space<vmem>>, %arg3: memref<80x256xbf16, #tpu.memory_space<vmem>>, %arg4: memref<256x256xbf16, #tpu.memory_space<vmem>>, %arg5: memref<16x256xf32, #tpu.memory_space<vmem>>) attributes {dimension_semantics = [#tpu.dimension_semantics<parallel>], iteration_bounds = array<i64: 1>, scalar_prefetch = 1 : i64, scratch_operands = 0 : i64, tpu.core_type = #tpu.core_type<tc>, window_params = [{transform_indices = @transform_0, window_bounds = array<i64: 16, 80>}, {pipeline_mode = #tpu.pipeline_mode<synchronous>, transform_indices = @transform_1, window_bounds = array<i64: 80, 256>}, {pipeline_mode = #tpu.pipeline_mode<synchronous>, transform_indices = @transform_2, window_bounds = array<i64: 256, 256>}, {transform_indices = @transform_3, window_bounds = array<i64: 16, 256>}]} {
    %c0 = arith.constant 0 : index
    %0 = memref.load %arg1[%c0] : memref<1xi32, #tpu.memory_space<smem>>
    %c16_i32 = arith.constant 16 : i32
    %1 = arith.muli %arg0, %c16_i32 : i32
    %c0_0 = arith.constant 0 : index
    %c0_1 = arith.constant 0 : index
    %2 = vector.load %arg2[%c0_0, %c0_1] : memref<16x80xf32, #tpu.memory_space<vmem>>, vector<16x80xf32>
    %3 = arith.truncf %2 : vector<16x80xf32> to vector<16x80xbf16>
    %c0_2 = arith.constant 0 : index
    %c0_3 = arith.constant 0 : index
    %4 = vector.load %arg3[%c0_2, %c0_3] : memref<80x256xbf16, #tpu.memory_space<vmem>>, vector<80x256xbf16>
    %cst = arith.constant dense<0.000000e+00> : vector<16x256xf32>
    %5 = tpu.matmul %3, %4, %cst {dimension_numbers = #tpu.dot_dimension_numbers<[1], [0], [0], [1], [0, 0, 1, 1], [], []>} : vector<16x80xbf16>, vector<80x256xbf16>, vector<16x256xf32> -> vector<16x256xf32>
    %cst_4 = arith.constant 0.000000e+00 : f32
    %6 = vector.broadcast %cst_4 : f32 to vector<16x256xf32>
    %7 = arith.maximumf %5, %6 : vector<16x256xf32>
    %8 = tpu.iota {dimensions = array<i32: 0>} : vector<16x256xi32>
    %9 = vector.broadcast %1 : i32 to vector<16x256xi32>
    %10 = arith.addi %8, %9 : vector<16x256xi32>
    %11 = tpu.iota {dimensions = array<i32: 1>} : vector<16x256xi32>
    %c-1640531527_i32 = arith.constant -1640531527 : i32
    %12 = vector.broadcast %c-1640531527_i32 : i32 to vector<16x256xi32>
    %13 = arith.muli %10, %12 : vector<16x256xi32>
    %c-2048144789_i32 = arith.constant -2048144789 : i32
    %14 = vector.broadcast %c-2048144789_i32 : i32 to vector<16x256xi32>
    %15 = arith.muli %11, %14 : vector<16x256xi32>
    %16 = arith.addi %13, %15 : vector<16x256xi32>
    %c668265263_i32 = arith.constant 668265263 : i32
    %17 = arith.muli %0, %c668265263_i32 : i32
    %c1_i32 = arith.constant 1 : i32
    %c374761393_i32 = arith.constant 374761393 : i32
    %18 = arith.muli %c1_i32, %c374761393_i32 : i32
    %19 = arith.addi %17, %18 : i32
    %20 = vector.broadcast %19 : i32 to vector<16x256xi32>
    %21 = arith.xori %16, %20 : vector<16x256xi32>
    %c16_i32_5 = arith.constant 16 : i32
    %22 = vector.broadcast %c16_i32_5 : i32 to vector<16x256xi32>
    %23 = arith.shrui %21, %22 : vector<16x256xi32>
    %24 = arith.xori %21, %23 : vector<16x256xi32>
    %c2146121005_i32 = arith.constant 2146121005 : i32
    %25 = vector.broadcast %c2146121005_i32 : i32 to vector<16x256xi32>
    %26 = arith.muli %24, %25 : vector<16x256xi32>
    %c15_i32 = arith.constant 15 : i32
    %27 = vector.broadcast %c15_i32 : i32 to vector<16x256xi32>
    %28 = arith.shrui %26, %27 : vector<16x256xi32>
    %29 = arith.xori %26, %28 : vector<16x256xi32>
    %c-2073254261_i32 = arith.constant -2073254261 : i32
    %30 = vector.broadcast %c-2073254261_i32 : i32 to vector<16x256xi32>
    %31 = arith.muli %29, %30 : vector<16x256xi32>
    %c16_i32_6 = arith.constant 16 : i32
    %32 = vector.broadcast %c16_i32_6 : i32 to vector<16x256xi32>
    %33 = arith.shrui %31, %32 : vector<16x256xi32>
    %34 = arith.xori %31, %33 : vector<16x256xi32>
    %c-2147483648_i32 = arith.constant -2147483648 : i32
    %35 = vector.broadcast %c-2147483648_i32 : i32 to vector<16x256xi32>
    %36 = arith.cmpi ult, %34, %35 : vector<16x256xi32>
    %37 = arith.addf %7, %7 : vector<16x256xf32>
    %cst_7 = arith.constant 0.000000e+00 : f32
    %38 = vector.broadcast %cst_7 : f32 to vector<16x256xf32>
    %39 = arith.select %36, %37, %38 : vector<16x256xi1>, vector<16x256xf32>
    %40 = arith.truncf %39 : vector<16x256xf32> to vector<16x256xbf16>
    %c0_8 = arith.constant 0 : index
    %c0_9 = arith.constant 0 : index
    %41 = vector.load %arg4[%c0_8, %c0_9] : memref<256x256xbf16, #tpu.memory_space<vmem>>, vector<256x256xbf16>
    %cst_10 = arith.constant dense<0.000000e+00> : vector<16x256xf32>
    %42 = tpu.matmul %40, %41, %cst_10 {dimension_numbers = #tpu.dot_dimension_numbers<[1], [0], [0], [1], [0, 0, 1, 1], [], []>} : vector<16x256xbf16>, vector<256x256xbf16>, vector<16x256xf32> -> vector<16x256xf32>
    %cst_11 = arith.constant 0.000000e+00 : f32
    %43 = vector.broadcast %cst_11 : f32 to vector<16x256xf32>
    %44 = arith.maximumf %42, %43 : vector<16x256xf32>
    %45 = tpu.iota {dimensions = array<i32: 0>} : vector<16x256xi32>
    %46 = vector.broadcast %1 : i32 to vector<16x256xi32>
    %47 = arith.addi %45, %46 : vector<16x256xi32>
    %48 = tpu.iota {dimensions = array<i32: 1>} : vector<16x256xi32>
    %c-1640531527_i32_12 = arith.constant -1640531527 : i32
    %49 = vector.broadcast %c-1640531527_i32_12 : i32 to vector<16x256xi32>
    %50 = arith.muli %47, %49 : vector<16x256xi32>
    %c-2048144789_i32_13 = arith.constant -2048144789 : i32
    %51 = vector.broadcast %c-2048144789_i32_13 : i32 to vector<16x256xi32>
    %52 = arith.muli %48, %51 : vector<16x256xi32>
    %53 = arith.addi %50, %52 : vector<16x256xi32>
    %c668265263_i32_14 = arith.constant 668265263 : i32
    %54 = arith.muli %0, %c668265263_i32_14 : i32
    %c2_i32 = arith.constant 2 : i32
    %c374761393_i32_15 = arith.constant 374761393 : i32
    %55 = arith.muli %c2_i32, %c374761393_i32_15 : i32
    %56 = arith.addi %54, %55 : i32
    %57 = vector.broadcast %56 : i32 to vector<16x256xi32>
    %58 = arith.xori %53, %57 : vector<16x256xi32>
    %c16_i32_16 = arith.constant 16 : i32
    %59 = vector.broadcast %c16_i32_16 : i32 to vector<16x256xi32>
    %60 = arith.shrui %58, %59 : vector<16x256xi32>
    %61 = arith.xori %58, %60 : vector<16x256xi32>
    %c2146121005_i32_17 = arith.constant 2146121005 : i32
    %62 = vector.broadcast %c2146121005_i32_17 : i32 to vector<16x256xi32>
    %63 = arith.muli %61, %62 : vector<16x256xi32>
    %c15_i32_18 = arith.constant 15 : i32
    %64 = vector.broadcast %c15_i32_18 : i32 to vector<16x256xi32>
    %65 = arith.shrui %63, %64 : vector<16x256xi32>
    %66 = arith.xori %63, %65 : vector<16x256xi32>
    %c-2073254261_i32_19 = arith.constant -2073254261 : i32
    %67 = vector.broadcast %c-2073254261_i32_19 : i32 to vector<16x256xi32>
    %68 = arith.muli %66, %67 : vector<16x256xi32>
    %c16_i32_20 = arith.constant 16 : i32
    %69 = vector.broadcast %c16_i32_20 : i32 to vector<16x256xi32>
    %70 = arith.shrui %68, %69 : vector<16x256xi32>
    %71 = arith.xori %68, %70 : vector<16x256xi32>
    %c-2147483648_i32_21 = arith.constant -2147483648 : i32
    %72 = vector.broadcast %c-2147483648_i32_21 : i32 to vector<16x256xi32>
    %73 = arith.cmpi ult, %71, %72 : vector<16x256xi32>
    %74 = arith.addf %44, %44 : vector<16x256xf32>
    %cst_22 = arith.constant 0.000000e+00 : f32
    %75 = vector.broadcast %cst_22 : f32 to vector<16x256xf32>
    %76 = arith.select %73, %74, %75 : vector<16x256xi1>, vector<16x256xf32>
    %c0_23 = arith.constant 0 : index
    %c0_24 = arith.constant 0 : index
    %77 = vector.load %arg5[%c0_23, %c0_24] : memref<16x256xf32, #tpu.memory_space<vmem>>, vector<16x256xf32>
    tpu.vector_store %arg5[%c0_23, %c0_24], %76 {strides = array<i32>} : memref<16x256xf32, #tpu.memory_space<vmem>>, vector<16x256xf32>,
    return
  }
  func.func @transform_0(%arg0: i32, %arg1: memref<1xi32, #tpu.memory_space<smem>>) -> (i32, i32) {
    %c0_i32 = arith.constant 0 : i32
    %c0_i32_0 = arith.constant 0 : i32
    return %arg0, %c0_i32 : i32, i32
  }
  func.func @transform_1(%arg0: i32, %arg1: memref<1xi32, #tpu.memory_space<smem>>) -> (i32, i32) {
    %c0_i32 = arith.constant 0 : i32
    %c0_i32_0 = arith.constant 0 : i32
    %c0_i32_1 = arith.constant 0 : i32
    return %c0_i32, %c0_i32_0 : i32, i32
  }
  func.func @transform_2(%arg0: i32, %arg1: memref<1xi32, #tpu.memory_space<smem>>) -> (i32, i32) {
    %c0_i32 = arith.constant 0 : i32
    %c0_i32_0 = arith.constant 0 : i32
    %c0_i32_1 = arith.constant 0 : i32
    return %c0_i32, %c0_i32_0 : i32, i32
  }
  func.func @transform_3(%arg0: i32, %arg1: memref<1xi32, #tpu.memory_space<smem>>) -> (i32, i32) {
    %c0_i32 = arith.constant 0 : i32
    %c0_i32_0 = arith.constant 0 : i32
    return %arg0, %c0_i32 : i32, i32
  }
}

</mosaic_0001>

<llo_original>
// kernel: tpu_custom_call.1
$region0: #{tpu_custom_call.1}
  #allocation0 [shape = 'u32[]', space=smem, size = 0x4, offset = 0x4, fixed_abs, tag = 'smem constant byte address 0x4 - core index']
  #allocation1 [shape = 'u32[144,128]{1,0:T(1,128)}', space=vmem, size = 0x12000, scoped, tag = 'internal scratch']
  #allocation2 [shape = 's32[1]{0}', space=sflag, size = 0x4, scoped, tag = 'scoped memory for tpu_custom_call.1']
  #allocation3 [shape = 's32[1]{0:T(128)S(6)}', space=smem, size = 0x200, scoped, tag = 'prefetched SMEM operand 0']
  %s0 = inlined_call_operand.<no memory space> [shape: s32[1], index: 0, kind: input, shape index: {}]
  %s1 = inlined_call_operand.hbm [shape: f32[16,80], index: 1, kind: input, shape index: {}]
  %s2 = inlined_call_operand.hbm [shape: bf16[80,256], index: 2, kind: input, shape index: {}]
  %s3 = inlined_call_operand.hbm [shape: bf16[256,256], index: 3, kind: input, shape index: {}]
  %s4 = inlined_call_operand.hbm [shape: f32[16,256], index: 4, kind: output, shape index: {}]
  %s5 = sld [smem:[#allocation0]]
  $region34: #{tpu_custom_call.1} parent=0
    _
  %s7 = ssub.s32 1, %s5
  %s8 = scalar_select 0, %s7, %s5
  %9 = sst [smem:[#allocation3]] %s0
  $region1: #{tpu_custom_call.1} parent=0
    #allocation4 [shape = 'u8[8192]{0}', space=vmem, size = 0x2000, scoped, tag = 'input window, operand 1, single buffered']
    #allocation5 [shape = 's32[1]{0}', space=sflag, size = 0x4, scoped, tag = 'scoped memory for tpu_custom_call.1']
    #allocation6 [shape = 's32[1]{0}', space=sflag, size = 0x4, scoped, tag = 'scoped memory for tpu_custom_call.1']
    #allocation7 [shape = 'u8[40960]{0}', space=vmem, size = 0xa000, scoped, tag = 'input window, operand 2, single buffered']
    #allocation8 [shape = 's32[1]{0}', space=sflag, size = 0x4, scoped, tag = 'scoped memory for tpu_custom_call.1']
    #allocation9 [shape = 'u8[131072]{0}', space=vmem, size = 0x20000, scoped, tag = 'input window, operand 3, single buffered']
    #allocation10 [shape = 'u8[16384]{0}', space=vmem, size = 0x4000, scoped, tag = 'output window, operand 0, single buffered']
    %10 = vsyncpa [#allocation5], 0
    %11 = vsyncpa [#allocation8], 0
    %12 = vsyncpa [#allocation6], 0
    // Predicated region
    $region2: #{tpu_custom_call.1} parent=1 // pred_check
      _
    $region3: #{tpu_custom_call.1} parent=1 // pred_check_branch
      %14 = sbr.rel (0) target = $region5
    $region4: #{tpu_custom_call.1} parent=1 // pred_region
      %s16 = ssub.s32 256, 256
      %17 = vsyncadd [#allocation5], %s16
      %s18 = sshll.u32 [#allocation4], 4
      %s19 = int_to_ptr.vmem [resolvable:$true] %s18
      %24 = dma.hbm_to_vmem [thread:$0]  %s1, 256, %s19, [#allocation5], 128, 128, 8
    $region5: #{tpu_custom_call.1} parent=1 // pred_fallthru
      _
    // Predicated region
    $region6: #{tpu_custom_call.1} parent=1 // pred_check
      _
    $region7: #{tpu_custom_call.1} parent=1 // pred_check_branch
      %26 = sbr.rel (0) target = $region9
    $region8: #{tpu_custom_call.1} parent=1 // pred_region
      %s28 = ssub.s32 1280, 1280
      %29 = vsyncadd [#allocation8], %s28
      %s30 = sshll.u32 [#allocation7], 4
      %s31 = int_to_ptr.vmem [resolvable:$true] %s30
      %36 = dma.hbm_to_vmem [thread:$0]  %s2, 1280, %s31, [#allocation8], 128, 128, 8
    $region9: #{tpu_custom_call.1} parent=1 // pred_fallthru
      _
    // Predicated region
    $region10: #{tpu_custom_call.1} parent=1 // pred_check
      _
    $region11: #{tpu_custom_call.1} parent=1 // pred_check_branch
      %38 = sbr.rel (0) target = $region13
    $region12: #{tpu_custom_call.1} parent=1 // pred_region
      %s40 = ssub.s32 4096, 4096
      %41 = vsyncadd [#allocation8], %s40
      %s42 = sshll.u32 [#allocation9], 4
      %s43 = int_to_ptr.vmem [resolvable:$true] %s42
      %48 = dma.hbm_to_vmem [thread:$0]  %s3, 4096, %s43, [#allocation8], 128, 128, 8
    $region13: #{tpu_custom_call.1} parent=1 // pred_fallthru
      _
    // Predicated region
    $region14: #{tpu_custom_call.1} parent=1 // pred_check
      _
    $region15: #{tpu_custom_call.1} parent=1 // pred_check_branch
      %50 = sbr.rel (0) target = $region17
    $region16: #{tpu_custom_call.1} parent=1 // pred_region
      %51 = dma.done [#allocation5], 256
    $region17: #{tpu_custom_call.1} parent=1 // pred_fallthru
      _
    // Predicated region
    $region18: #{tpu_custom_call.1} parent=1 // pred_check
      _
    $region19: #{tpu_custom_call.1} parent=1 // pred_check_branch
      %53 = sbr.rel (0) target = $region21
    $region20: #{tpu_custom_call.1} parent=1 // pred_region
      %54 = dma.done [#allocation8], 1280
    $region21: #{tpu_custom_call.1} parent=1 // pred_fallthru
      _
    // Predicated region
    $region22: #{tpu_custom_call.1} parent=1 // pred_check
      _
    $region23: #{tpu_custom_call.1} parent=1 // pred_check_branch
      %56 = sbr.rel (0) target = $region25
    $region24: #{tpu_custom_call.1} parent=1 // pred_region
      %57 = dma.done [#allocation8], 4096
    $region25: #{tpu_custom_call.1} parent=1 // pred_fallthru
      _
    %s59 = sld [smem:[#allocation3]]
    %s60 = smul.u32 0, 16
    %v61 = vld [vmem:[#allocation4] sm:$0xff]
    %v62 = vld [vmem:[#allocation4 + $0x8] sm:$0xff]
    %v63 = vpack.c.bf16 %v62, %v61
    %v64 = vld [vmem:[#allocation7] sm:$0xff]
    %v65 = vld [vmem:[#allocation7 + $0x8] sm:$0xff]
    %v66 = vld [vmem:[#allocation7 + $0x10] sm:$0xff]
    %v67 = vld [vmem:[#allocation7 + $0x18] sm:$0xff]
    %v68 = vld [vmem:[#allocation7 + $0x20] sm:$0xff]
    %v69 = vld [vmem:[#allocation7 + $0x28] sm:$0xff]
    %v70 = vld [vmem:[#allocation7 + $0x30] sm:$0xff]
    %v71 = vld [vmem:[#allocation7 + $0x38] sm:$0xff]
    %v72 = vld [vmem:[#allocation7 + $0x40] sm:$0xff]
    %v73 = vld [vmem:[#allocation7 + $0x48] sm:$0xff]
    %v84 = vunpack.c.l.b16 %v64
    %v85 = vunpack.c.h.b16 %v64
    %v86 = vunpack.c.l.b16 %v65
    %v87 = vunpack.c.h.b16 %v65
    %v88 = vunpack.c.l.b16 %v66
    %v89 = vunpack.c.h.b16 %v66
    %v90 = vunpack.c.l.b16 %v67
    %v91 = vunpack.c.h.b16 %v67
    %v92 = vunpack.c.l.b16 %v68
    %v93 = vunpack.c.h.b16 %v68
    %v94 = vunpack.c.l.b16 %v69
    %v95 = vunpack.c.h.b16 %v69
    %v96 = vunpack.c.l.b16 %v70
    %v97 = vunpack.c.h.b16 %v70
    %v98 = vunpack.c.l.b16 %v71
    %v99 = vunpack.c.h.b16 %v71
    %v100 = vunpack.c.l.b16 %v72
    %v101 = vunpack.c.h.b16 %v72
    %v102 = vunpack.c.l.b16 %v73
    %v103 = vunpack.c.h.b16 %v73
    %v104 = vpack.c.b16 %v86, %v84
    %v105 = vpack.c.b16 %v87, %v85
    %v106 = vpack.c.b16 %v90, %v88
    %v107 = vpack.c.b16 %v91, %v89
    %v108 = vpack.c.b16 %v94, %v92
    %v109 = vpack.c.b16 %v95, %v93
    %v110 = vpack.c.b16 %v98, %v96
    %v111 = vpack.c.b16 %v99, %v97
    %v112 = vpack.c.b16 %v102, %v100
    %v113 = vpack.c.b16 %v103, %v101
    %vm124 = vcmask 654336
    %v126 = vsel %vm124, %v63, 0
    %128 = vmatprep.subr.bf16.mxu0 %v105
    %129 = vmatpush1.bf16.msra.mxu0 %v104
    %130 = vmatprep.subr.bf16.mxu0 %v107
    %131 = vmatpush1.bf16.msra.mxu0 %v106
    %132 = vmatprep.subr.bf16.mxu0 %v109
    %133 = vmatpush1.bf16.msra.mxu0 %v108
    %134 = vmatprep.subr.bf16.mxu0 %v111
    %135 = vmatpush1.bf16.msra.mxu0 %v110
    %136 = vmatprep.subr.bf16.mxu0 %v113
    %137 = vmatpush1.bf16.msra.mxu0 %v112
    %138 = vmatprep.subr.bf16.mxu0 0
    %139 = vmatpush1.bf16.msra.mxu0 0
    %140 = vmatprep.subr.bf16.mxu0 0
    %141 = vmatpush1.bf16.msra.mxu0 0
    %142 = vmatprep.subr.bf16.mxu0 0
    %143 = vmatpush1.bf16.msra.mxu0 0
    %144 = vmatprep.subr.bf16.mxu0 0
    %145 = vmatpush1.bf16.msra.mxu0 0
    %146 = vmatprep.subr.bf16.mxu0 0
    %147 = vmatpush1.bf16.msra.mxu0 0
    %148 = vmatprep.subr.bf16.mxu0 0
    %149 = vmatpush1.bf16.msra.mxu0 0
    %150 = vmatprep.subr.bf16.mxu0 0
    %151 = vmatpush1.bf16.msra.mxu0 0
    %152 = vmatprep.subr.bf16.mxu0 0
    %153 = vmatpush1.bf16.msra.mxu0 0
    %154 = vmatprep.subr.bf16.mxu0 0
    %155 = vmatpush1.bf16.msra.mxu0 0
    %156 = vmatprep.subr.bf16.mxu0 0
    %157 = vmatpush1.bf16.msra.mxu0 0
    %158 = vmatprep.subr.bf16.mxu0 0
    %159 = vmatpush1.bf16.msra.mxu0 0
    %160 = vmatprep.mubr.bf16.mxu0 0
    %161 = vmatmul.mubr.bf16.gmra.mrb[0].mxu0 %v126
    %v162 = vpop.f32.mrb[0].mxu0
    %v163 = vadd.f32 0.0, %v162
    %v164 = vpop.f32.mrb[0].mxu0
    %v165 = vadd.f32 0.0, %v164
    %v166 = vpop.f32.mrb[0].mxu0
    %v167 = vadd.f32 0.0, %v166
    %v168 = vpop.f32.mrb[0].mxu0
    %v169 = vadd.f32 0.0, %v168
    %170 = vdwg.mxu0
    %v171 = vmax.f32 %v163, 0.0
    %v172 = vmax.f32 %v165, 0.0
    %v173 = vmax.f32 %v167, 0.0
    %v174 = vmax.f32 %v169, 0.0
    %v175 = vlaneseq
    %v176 = vshrl.u32 %v175, 7
    %v177 = vadd.s32 %v176, 8
    %v178 = vstv %s60
    %v179 = vadd.s32 %v176, %v178
    %v180 = vadd.s32 %v177, %v178
    %v181 = vlaneseq
    %v182 = vand.u32 %v181, 127
    %v183 = vadd.s32 %v182, 128
    %v184 = vmul.u32 %v179, 2654435769
    %v185 = vmul.u32 %v180, 2654435769
    %v186 = vmul.u32 %v182, 2246822507
    %v187 = vmul.u32 %v183, 2246822507
    %v188 = vadd.s32 %v184, %v186
    %v189 = vadd.s32 %v184, %v187
    %v190 = vadd.s32 %v185, %v186
    %v191 = vadd.s32 %v185, %v187
    %s192 = smul.u32 %s59, 668265263
    %s193 = sadd.s32 %s192, 374761393
    %v194 = vstv %s193
    %v195 = vxor.u32 %v188, %v194
    %v196 = vxor.u32 %v189, %v194
    %v197 = vxor.u32 %v190, %v194
    %v198 = vxor.u32 %v191, %v194
    %v199 = vshrl.u32 %v195, 16
    %v200 = vshrl.u32 %v196, 16
    %v201 = vshrl.u32 %v197, 16
    %v202 = vshrl.u32 %v198, 16
    %v203 = vxor.u32 %v195, %v199
    %v204 = vxor.u32 %v196, %v200
    %v205 = vxor.u32 %v197, %v201
    %v206 = vxor.u32 %v198, %v202
    %v207 = vmul.u32 %v203, 2146121005
    %v208 = vmul.u32 %v204, 2146121005
    %v209 = vmul.u32 %v205, 2146121005
    %v210 = vmul.u32 %v206, 2146121005
    %v211 = vshrl.u32 %v207, 15
    %v212 = vshrl.u32 %v208, 15
    %v213 = vshrl.u32 %v209, 15
    %v214 = vshrl.u32 %v210, 15
    %v215 = vxor.u32 %v207, %v211
    %v216 = vxor.u32 %v208, %v212
    %v217 = vxor.u32 %v209, %v213
    %v218 = vxor.u32 %v210, %v214
    %v219 = vmul.u32 %v215, 2221713035
    %v220 = vmul.u32 %v216, 2221713035
    %v221 = vmul.u32 %v217, 2221713035
    %v222 = vmul.u32 %v218, 2221713035
    %v223 = vshrl.u32 %v219, 16
    %v224 = vshrl.u32 %v220, 16
    %v225 = vshrl.u32 %v221, 16
    %v226 = vshrl.u32 %v222, 16
    %v227 = vxor.u32 %v219, %v223
    %v228 = vxor.u32 %v220, %v224
    %v229 = vxor.u32 %v221, %v225
    %v230 = vxor.u32 %v222, %v226
    %vm231 = vcmp.lt.u32.totalorder %v227, 2147483648
    %vm232 = vcmp.lt.u32.totalorder %v228, 2147483648
    %vm233 = vcmp.lt.u32.totalorder %v229, 2147483648
    %vm234 = vcmp.lt.u32.totalorder %v230, 2147483648
    %v235 = vadd.f32 %v171, %v171
    %v236 = vadd.f32 %v172, %v172
    %v237 = vadd.f32 %v173, %v173
    %v238 = vadd.f32 %v174, %v174
    %v239 = vsel %vm231, %v235, 0.0
    %v240 = vsel %vm232, %v236, 0.0
    %v241 = vsel %vm233, %v237, 0.0
    %v242 = vsel %vm234, %v238, 0.0
    %v243 = vpack.c.bf16 %v241, %v239
    %v244 = vpack.c.bf16 %v242, %v240
    %v245 = vld [vmem:[#allocation9] sm:$0xff]
    %v246 = vld [vmem:[#allocation9 + $0x8] sm:$0xff]
    %v247 = vld [vmem:[#allocation9 + $0x10] sm:$0xff]
    %v248 = vld [vmem:[#allocation9 + $0x18] sm:$0xff]
    %v249 = vld [vmem:[#allocation9 + $0x20] sm:$0xff]
    %v250 = vld [vmem:[#allocation9 + $0x28] sm:$0xff]
    %v251 = vld [vmem:[#allocation9 + $0x30] sm:$0xff]
    %v252 = vld [vmem:[#allocation9 + $0x38] sm:$0xff]
    %v253 = vld [vmem:[#allocation9 + $0x40] sm:$0xff]
    %v254 = vld [vmem:[#allocation9 + $0x48] sm:$0xff]
    %v255 = vld [vmem:[#allocation9 + $0x50] sm:$0xff]
    %v256 = vld [vmem:[#allocation9 + $0x58] sm:$0xff]
    %v257 = vld [vmem:[#allocation9 + $0x60] sm:$0xff]
    %v258 = vld [vmem:[#allocation9 + $0x68] sm:$0xff]
    %v259 = vld [vmem:[#allocation9 + $0x70] sm:$0xff]
    %v260 = vld [vmem:[#allocation9 + $0x78] sm:$0xff]
    %v261 = vld [vmem:[#allocation9 + $0x80] sm:$0xff]
    %v262 = vld [vmem:[#allocation9 + $0x88] sm:$0xff]
    %v263 = vld [vmem:[#allocation9 + $0x90] sm:$0xff]
    %v264 = vld [vmem:[#allocation9 + $0x98] sm:$0xff]
    %v265 = vld [vmem:[#allocation9 + $0xa0] sm:$0xff]
    %v266 = vld [vmem:[#allocation9 + $0xa8] sm:$0xff]
    %v267 = vld [vmem:[#allocation9 + $0xb0] sm:$0xff]
    %v268 = vld [vmem:[#allocation9 + $0xb8] sm:$0xff]
    %v269 = vld [vmem:[#allocation9 + $0xc0] sm:$0xff]
    %v270 = vld [vmem:[#allocation9 + $0xc8] sm:$0xff]
    %v271 = vld [vmem:[#allocation9 + $0xd0] sm:$0xff]
    %v272 = vld [vmem:[#allocation9 + $0xd8] sm:$0xff]
    %v273 = vld [vmem:[#allocation9 + $0xe0] sm:$0xff]
    %v274 = vld [vmem:[#allocation9 + $0xe8] sm:$0xff]
    %v275 = vld [vmem:[#allocation9 + $0xf0] sm:$0xff]
    %v276 = vld [vmem:[#allocation9 + $0xf8] sm:$0xff]
    %v309 = vunpack.c.l.b16 %v245
    %v310 = vunpack.c.h.b16 %v245
    %v311 = vunpack.c.l.b16 %v246
    %v312 = vunpack.c.h.b16 %v246
    %v313 = vunpack.c.l.b16 %v247
    %v314 = vunpack.c.h.b16 %v247
    %v315 = vunpack.c.l.b16 %v248
    %v316 = vunpack.c.h.b16 %v248
    %v317 = vunpack.c.l.b16 %v249
    %v318 = vunpack.c.h.b16 %v249
    %v319 = vunpack.c.l.b16 %v250
    %v320 = vunpack.c.h.b16 %v250
    %v321 = vunpack.c.l.b16 %v251
    %v322 = vunpack.c.h.b16 %v251
    %v323 = vunpack.c.l.b16 %v252
    %v324 = vunpack.c.h.b16 %v252
    %v325 = vunpack.c.l.b16 %v253
    %v326 = vunpack.c.h.b16 %v253
    %v327 = vunpack.c.l.b16 %v254
    %v328 = vunpack.c.h.b16 %v254
    %v329 = vunpack.c.l.b16 %v255
    %v330 = vunpack.c.h.b16 %v255
    %v331 = vunpack.c.l.b16 %v256
    %v332 = vunpack.c.h.b16 %v256
    %v333 = vunpack.c.l.b16 %v257
    %v334 = vunpack.c.h.b16 %v257
    %v335 = vunpack.c.l.b16 %v258
    %v336 = vunpack.c.h.b16 %v258
    %v337 = vunpack.c.l.b16 %v259
    %v338 = vunpack.c.h.b16 %v259
    %v339 = vunpack.c.l.b16 %v260
    %v340 = vunpack.c.h.b16 %v260
    %v341 = vunpack.c.l.b16 %v261
    %v342 = vunpack.c.h.b16 %v261
    %v343 = vunpack.c.l.b16 %v262
    %v344 = vunpack.c.h.b16 %v262
    %v345 = vunpack.c.l.b16 %v263
    %v346 = vunpack.c.h.b16 %v263
    %v347 = vunpack.c.l.b16 %v264
    %v348 = vunpack.c.h.b16 %v264
    %v349 = vunpack.c.l.b16 %v265
    %v350 = vunpack.c.h.b16 %v265
    %v351 = vunpack.c.l.b16 %v266
    %v352 = vunpack.c.h.b16 %v266
    %v353 = vunpack.c.l.b16 %v267
    %v354 = vunpack.c.h.b16 %v267
    %v355 = vunpack.c.l.b16 %v268
    %v356 = vunpack.c.h.b16 %v268
    %v357 = vunpack.c.l.b16 %v269
    %v358 = vunpack.c.h.b16 %v269
    %v359 = vunpack.c.l.b16 %v270
    %v360 = vunpack.c.h.b16 %v270
    %v361 = vunpack.c.l.b16 %v271
    %v362 = vunpack.c.h.b16 %v271
    %v363 = vunpack.c.l.b16 %v272
    %v364 = vunpack.c.h.b16 %v272
    %v365 = vunpack.c.l.b16 %v273
    %v366 = vunpack.c.h.b16 %v273
    %v367 = vunpack.c.l.b16 %v274
    %v368 = vunpack.c.h.b16 %v274
    %v369 = vunpack.c.l.b16 %v275
    %v370 = vunpack.c.h.b16 %v275
    %v371 = vunpack.c.l.b16 %v276
    %v372 = vunpack.c.h.b16 %v276
    %v373 = vpack.c.b16 %v311, %v309
    %v374 = vpack.c.b16 %v312, %v310
    %v375 = vpack.c.b16 %v315, %v313
    %v376 = vpack.c.b16 %v316, %v314
    %v377 = vpack.c.b16 %v319, %v317
    %v378 = vpack.c.b16 %v320, %v318
    %v379 = vpack.c.b16 %v323, %v321
    %v380 = vpack.c.b16 %v324, %v322
    %v381 = vpack.c.b16 %v327, %v325
    %v382 = vpack.c.b16 %v328, %v326
    %v383 = vpack.c.b16 %v331, %v329
    %v384 = vpack.c.b16 %v332, %v330
    %v385 = vpack.c.b16 %v335, %v333
    %v386 = vpack.c.b16 %v336, %v334
    %v387 = vpack.c.b16 %v339, %v337
    %v388 = vpack.c.b16 %v340, %v338
    %v389 = vpack.c.b16 %v343, %v341
    %v390 = vpack.c.b16 %v344, %v342
    %v391 = vpack.c.b16 %v347, %v345
    %v392 = vpack.c.b16 %v348, %v346
    %v393 = vpack.c.b16 %v351, %v349
    %v394 = vpack.c.b16 %v352, %v350
    %v395 = vpack.c.b16 %v355, %v353
    %v396 = vpack.c.b16 %v356, %v354
    %v397 = vpack.c.b16 %v359, %v357
    %v398 = vpack.c.b16 %v360, %v358
    %v399 = vpack.c.b16 %v363, %v361
    %v400 = vpack.c.b16 %v364, %v362
    %v401 = vpack.c.b16 %v367, %v365
    %v402 = vpack.c.b16 %v368, %v366
    %v403 = vpack.c.b16 %v371, %v369
    %v404 = vpack.c.b16 %v372, %v370
    %437 = vmatprep.subr.bf16.mxu0 %v374
    %438 = vmatpush1.bf16.msra.mxu0 %v373
    %439 = vmatprep.subr.bf16.mxu0 %v376
    %440 = vmatpush1.bf16.msra.mxu0 %v375
    %441 = vmatprep.subr.bf16.mxu0 %v378
    %442 = vmatpush1.bf16.msra.mxu0 %v377
    %443 = vmatprep.subr.bf16.mxu0 %v380
    %444 = vmatpush1.bf16.msra.mxu0 %v379
    %445 = vmatprep.subr.bf16.mxu0 %v382
    %446 = vmatpush1.bf16.msra.mxu0 %v381
    %447 = vmatprep.subr.bf16.mxu0 %v384
    %448 = vmatpush1.bf16.msra.mxu0 %v383
    %449 = vmatprep.subr.bf16.mxu0 %v386
    %450 = vmatpush1.bf16.msra.mxu0 %v385
    %451 = vmatprep.subr.bf16.mxu0 %v388
    %452 = vmatpush1.bf16.msra.mxu0 %v387
    %453 = vmatprep.subr.bf16.mxu0 %v390
    %454 = vmatpush1.bf16.msra.mxu0 %v389
    %455 = vmatprep.subr.bf16.mxu0 %v392
    %456 = vmatpush1.bf16.msra.mxu0 %v391
    %457 = vmatprep.subr.bf16.mxu0 %v394
    %458 = vmatpush1.bf16.msra.mxu0 %v393
    %459 = vmatprep.subr.bf16.mxu0 %v396
    %460 = vmatpush1.bf16.msra.mxu0 %v395
    %461 = vmatprep.subr.bf16.mxu0 %v398
    %462 = vmatpush1.bf16.msra.mxu0 %v397
    %463 = vmatprep.subr.bf16.mxu0 %v400
    %464 = vmatpush1.bf16.msra.mxu0 %v399
    %465 = vmatprep.subr.bf16.mxu0 %v402
    %466 = vmatpush1.bf16.msra.mxu0 %v401
    %467 = vmatprep.subr.bf16.mxu0 %v404
    %468 = vmatpush1.bf16.msra.mxu0 %v403
    %469 = vmatprep.mubr.bf16.mxu0 %v244
    %470 = vmatmul.mubr.bf16.gmra.mrb[0].mxu0 %v243
    %v471 = vpop.f32.mrb[0].mxu0
    %v472 = vadd.f32 0.0, %v471
    %v473 = vpop.f32.mrb[0].mxu0
    %v474 = vadd.f32 0.0, %v473
    %v475 = vpop.f32.mrb[0].mxu0
    %v476 = vadd.f32 0.0, %v475
    %v477 = vpop.f32.mrb[0].mxu0
    %v478 = vadd.f32 0.0, %v477
    %479 = vdwg.mxu0
    %v480 = vmax.f32 %v472, 0.0
    %v481 = vmax.f32 %v474, 0.0
    %v482 = vmax.f32 %v476, 0.0
    %v483 = vmax.f32 %v478, 0.0
    %s484 = sadd.s32 %s192, 749522786
    %v485 = vstv %s484
    %v486 = vxor.u32 %v188, %v485
    %v487 = vxor.u32 %v189, %v485
    %v488 = vxor.u32 %v190, %v485
    %v489 = vxor.u32 %v191, %v485
    %v490 = vshrl.u32 %v486, 16
    %v491 = vshrl.u32 %v487, 16
    %v492 = vshrl.u32 %v488, 16
    %v493 = vshrl.u32 %v489, 16
    %v494 = vxor.u32 %v486, %v490
    %v495 = vxor.u32 %v487, %v491
    %v496 = vxor.u32 %v488, %v492
    %v497 = vxor.u32 %v489, %v493
    %v498 = vmul.u32 %v494, 2146121005
    %v499 = vmul.u32 %v495, 2146121005
    %v500 = vmul.u32 %v496, 2146121005
    %v501 = vmul.u32 %v497, 2146121005
    %v502 = vshrl.u32 %v498, 15
    %v503 = vshrl.u32 %v499, 15
    %v504 = vshrl.u32 %v500, 15
    %v505 = vshrl.u32 %v501, 15
    %v506 = vxor.u32 %v498, %v502
    %v507 = vxor.u32 %v499, %v503
    %v508 = vxor.u32 %v500, %v504
    %v509 = vxor.u32 %v501, %v505
    %v510 = vmul.u32 %v506, 2221713035
    %v511 = vmul.u32 %v507, 2221713035
    %v512 = vmul.u32 %v508, 2221713035
    %v513 = vmul.u32 %v509, 2221713035
    %v514 = vshrl.u32 %v510, 16
    %v515 = vshrl.u32 %v511, 16
    %v516 = vshrl.u32 %v512, 16
    %v517 = vshrl.u32 %v513, 16
    %v518 = vxor.u32 %v510, %v514
    %v519 = vxor.u32 %v511, %v515
    %v520 = vxor.u32 %v512, %v516
    %v521 = vxor.u32 %v513, %v517
    %vm522 = vcmp.lt.u32.totalorder %v518, 2147483648
    %vm523 = vcmp.lt.u32.totalorder %v519, 2147483648
    %vm524 = vcmp.lt.u32.totalorder %v520, 2147483648
    %vm525 = vcmp.lt.u32.totalorder %v521, 2147483648
    %v526 = vadd.f32 %v480, %v480
    %v527 = vadd.f32 %v481, %v481
    %v528 = vadd.f32 %v482, %v482
    %v529 = vadd.f32 %v483, %v483
    %v530 = vsel %vm522, %v526, 0.0
    %v531 = vsel %vm523, %v527, 0.0
    %v532 = vsel %vm524, %v528, 0.0
    %v533 = vsel %vm525, %v529, 0.0
    %534 = vst [vmem:[#allocation10] sm:$0xff] %v530
    %535 = vst [vmem:[#allocation10 + $0x8] sm:$0xff] %v531
    %536 = vst [vmem:[#allocation10 + $0x10] sm:$0xff] %v532
    %537 = vst [vmem:[#allocation10 + $0x18] sm:$0xff] %v533
    // Predicated region
    $region26: #{tpu_custom_call.1} parent=1 // pred_check
      _
    $region27: #{tpu_custom_call.1} parent=1 // pred_check_branch
      %539 = sbr.rel (0) target = $region29
    $region28: #{tpu_custom_call.1} parent=1 // pred_region
      %s541 = ssub.s32 512, 512
      %542 = vsyncadd [#allocation6], %s541
      %s543 = sshll.u32 [#allocation10], 4
      %s544 = int_to_ptr.vmem [resolvable:$true] %s543
      %549 = dma.vmem_to_hbm [thread:$0]  %s544, 512, %s4, [#allocation6], 256, 256, 16
    $region29: #{tpu_custom_call.1} parent=1 // pred_fallthru
      _
    // Predicated region
    $region30: #{tpu_custom_call.1} parent=1 // pred_check
      _
    $region31: #{tpu_custom_call.1} parent=1 // pred_check_branch
      %551 = sbr.rel (0) target = $region33
    $region32: #{tpu_custom_call.1} parent=1 // pred_region
      %552 = dma.done [#allocation6], 512
    $region33: #{tpu_custom_call.1} parent=1 // pred_fallthru
      _
    %553 = vsyncpa [#allocation5], 1
    %554 = vsyncpa [#allocation8], 1
    %555 = vsyncpa [#allocation6], 1

</llo_original>
